<compile_context>
chip_gen: v6e
topology: v6e:2x2x1
jax: 0.10.0
libtpu: 0.0.40
codegen_flags: <defaults>
</compile_context>

<pallas_src>
import functools

import jax
import jax.numpy as jnp
from jax.experimental import pallas as pl
from jax.experimental.pallas import tpu as pltpu


def _round_up(x, m):
    return ((x + m - 1) // m) * m


def _largest_div_mult128(h, cap):
    """Largest multiple of 128 that divides h and is <= cap (0 if none)."""
    best = 0
    t = 128
    while t <= min(h, cap):
        if h % t == 0:
            best = t
        t += 128
    return best


def _vmem_budget_bytes():
    """Per-generation VMEM budget, leaving headroom for compiler scratch."""
    cap = 64 * 1024 * 1024  # conservative default (v7x physical)
    try:
        info = pltpu.get_tpu_info()
        cap = int(getattr(info, "vmem_capacity_bytes", cap))
    except Exception:
        pass
    # ~80% of physical, at least 8 MiB of headroom, never below 16 MiB.
    return max(min(int(cap * 0.8), cap - 8 * 1024 * 1024), 16 * 1024 * 1024)


# ----------------------------------------------------------------------------
# Kernel bodies
# ----------------------------------------------------------------------------
def _residual_ff_resident_kernel(x_ref, w1_ref, b1_ref, w2_ref, b2_ref, o_ref):
    """Weights fully VMEM-resident; single (row-tile) grid axis."""
    x = x_ref[...]                                             # (tm, D)
    h = jnp.dot(x.astype(jnp.bfloat16), w1_ref[...],
                preferred_element_type=jnp.float32)            # (tm, H) f32
    h = jax.nn.gelu(h + b1_ref[...], approximate=True)
    y = jnp.dot(h.astype(jnp.bfloat16), w2_ref[...],
                preferred_element_type=jnp.float32)            # (tm, D) f32
    o_ref[...] = (y + b2_ref[...] + x.astype(jnp.float32)).astype(o_ref.dtype)


def _residual_ff_tiled_kernel(x_ref, w1_ref, b1_ref, w2_ref, b2_ref, o_ref,
                              acc_ref, xb_ref):
    """H-reduction grid axis with f32 accumulator (weights streamed in tiles)."""
    k = pl.program_id(1)

    @pl.when(k == 0)
    def _():
        acc_ref[...] = jnp.zeros_like(acc_ref)
        # Hoisted bf16 cast of the (resident) x tile: done once per row tile.
        xb_ref[...] = x_ref[...].astype(jnp.bfloat16)

    h = jnp.dot(xb_ref[...], w1_ref[...],
                preferred_element_type=jnp.float32)            # (tm, tk) f32
    h = jax.nn.gelu(h + b1_ref[...], approximate=True)
    acc_ref[...] += jnp.dot(h.astype(jnp.bfloat16), w2_ref[...],
                            preferred_element_type=jnp.float32)  # (tm, D) f32

    @pl.when(k == pl.num_programs(1) - 1)
    def _():
        res = acc_ref[...] + b2_ref[...] + x_ref[...].astype(jnp.float32)
        o_ref[...] = res.astype(o_ref.dtype)


# ----------------------------------------------------------------------------
# Tile / path selection (all static at trace time)
# ----------------------------------------------------------------------------
def _pick_config(M, D, H, x_itemsize, out_itemsize, tm_req, tk_req, budget,
                 prefer_resident):
    m8 = _round_up(max(M, 1), 8)
    tm_cap = min(_round_up(max(tm_req, 8), 8), m8)

    def resident_cost(tm):
        return (2 * tm * D * x_itemsize          # x tile (double-buffered)
                + 2 * tm * D * out_itemsize      # out tile (double-buffered)
                + 4 * D * H * 2                  # W1 + W2, bf16, double-buffered
                + 2 * (H + D) * 4                # biases
                + tm * H * 4                     # GELU intermediate (f32)
                + tm * D * 4)                    # 2nd matmul result headroom

    if prefer_resident:
        tm = tm_cap
        while tm > 8 and resident_cost(tm) > budget:
            tm = max(_round_up(tm // 2, 8), 8)
        if resident_cost(tm) <= budget and (tm == tm_cap or tm >= 256):
            return "resident", tm, H

    # H-tiled fallback: tk is always a 128-multiple divisor of H (or H itself
    # if H has no such divisor, e.g. H < 128).
    tk = _largest_div_mult128(H, min(max(tk_req, 128), H))
    if tk == 0:
        tk = H

    def tiled_cost(tm, tk):
        return (2 * tm * D * x_itemsize + tm * D * 2   # x tile + bf16 scratch
                + 2 * tm * D * out_itemsize            # out tile
                + tm * D * 4                           # f32 accumulator
                + 4 * D * tk * 2                       # W1/W2 tiles (bf16, dbuf)
                + 2 * (tk + D) * 4                     # bias tiles
                + tm * tk * 4                          # GELU intermediate
                + tm * D * 4)                          # result headroom

    tm = tm_cap
    # Shrink tk first (keeps FLOPs/byte ∝ tm high), then tm as a last resort.
    while tk > 128 and tiled_cost(tm, tk) > budget:
        smaller = _largest_div_mult128(H, tk - 128)
        if smaller == 0:
            break
        tk = smaller
    while tm > 8 and tiled_cost(tm, tk) > budget:
        tm = max(_round_up(tm // 2, 8), 8)
    return "tiled", tm, tk


# ----------------------------------------------------------------------------
# Public wrapper
# ----------------------------------------------------------------------------
@functools.partial(jax.jit, static_argnames=("tm", "tk", "prefer_resident"))
def residual_feedforward(x, w1, b1, w2, b2, *, tm=1024, tk=512,
                         prefer_resident=True):
    """y = fn(x) + x with fn = GELU MLP, fused in one Pallas call.

    x: (B, N, D); w1: (D, H), b1: (H,), w2: (H, D), b2: (D,)
    tm: requested row tile (tokens / grid step); tk: requested H-reduction tile.
    """
    B, N, D = x.shape
    H = w1.shape[1]
    M = B * N

    x2 = x.reshape(M, D)                    # no padding copy; grid uses cdiv
    out_itemsize = x.dtype.itemsize
    budget = _vmem_budget_bytes()

    mode, tm_eff, tk_eff = _pick_config(
        M, D, H, x.dtype.itemsize, out_itemsize, tm, tk, budget,
        prefer_resident)

    n_m = -(-M // tm_eff)                   # cdiv

    w1b = w1.astype(jnp.bfloat16)
    w2b = w2.astype(jnp.bfloat16)
    b1_2 = b1.reshape(1, H).astype(jnp.float32)
    b2_2 = b2.reshape(1, D).astype(jnp.float32)

    # Honest byte estimate: weights are fetched once (resident) or once per
    # row tile (tiled path).
    weight_bytes = 4 * D * H if mode == "resident" else n_m * 4 * D * H
    cost = pl.CostEstimate(
        flops=4 * M * D * H,                               # two matmuls
        transcendentals=M * H,                             # tanh in GELU
        bytes_accessed=(M * D * (x.dtype.itemsize + out_itemsize)
                        + weight_bytes + (H + D) * 4),
    )

    if mode == "resident":
        out2 = pl.pallas_call(
            _residual_ff_resident_kernel,
            out_shape=jax.ShapeDtypeStruct((M, D), x.dtype),
            grid_spec=pltpu.PrefetchScalarGridSpec(
                num_scalar_prefetch=0,
                grid=(n_m,),
                in_specs=[
                    pl.BlockSpec((tm_eff, D), lambda i: (i, 0)),   # x rows
                    pl.BlockSpec((D, H), lambda i: (0, 0)),        # W1 (resident)
                    pl.BlockSpec((1, H), lambda i: (0, 0)),        # b1 (resident)
                    pl.BlockSpec((H, D), lambda i: (0, 0)),        # W2 (resident)
                    pl.BlockSpec((1, D), lambda i: (0, 0)),        # b2 (resident)
                ],
                out_specs=pl.BlockSpec((tm_eff, D), lambda i: (i, 0)),
            ),
            compiler_params=pltpu.CompilerParams(
                dimension_semantics=("parallel",),
                vmem_limit_bytes=budget,
            ),
            cost_estimate=cost,
        )(x2, w1b, b1_2, w2b, b2_2)
    else:
        nk = H // tk_eff
        out2 = pl.pallas_call(
            _residual_ff_tiled_kernel,
            out_shape=jax.ShapeDtypeStruct((M, D), x.dtype),
            grid_spec=pltpu.PrefetchScalarGridSpec(
                num_scalar_prefetch=0,
                grid=(n_m, nk),
                in_specs=[
                    pl.BlockSpec((tm_eff, D), lambda i, k: (i, 0)),   # x rows
                    pl.BlockSpec((D, tk_eff), lambda i, k: (0, k)),   # W1 col tile
                    pl.BlockSpec((1, tk_eff), lambda i, k: (0, k)),   # b1 tile
                    pl.BlockSpec((tk_eff, D), lambda i, k: (k, 0)),   # W2 row tile
                    pl.BlockSpec((1, D), lambda i, k: (0, 0)),        # b2
                ],
                out_specs=pl.BlockSpec((tm_eff, D), lambda i, k: (i, 0)),
                scratch_shapes=[
                    pltpu.VMEM((tm_eff, D), jnp.float32),   # accumulator
                    pltpu.VMEM((tm_eff, D), jnp.bfloat16),  # hoisted bf16 x
                ],
            ),
            compiler_params=pltpu.CompilerParams(
                dimension_semantics=("parallel", "arbitrary"),
                vmem_limit_bytes=budget,
            ),
            cost_estimate=cost,
        )(x2, w1b, b1_2, w2b, b2_2)

    return out2.reshape(B, N, D)


def _reference(x, w1, b1, w2, b2):
    # Same numerical recipe as the kernel: bf16 MXU inputs, f32 accumulation.
    B, N, D = x.shape
    x2 = x.reshape(-1, D)
    h = jnp.dot(x2.astype(jnp.bfloat16), w1.astype(jnp.bfloat16),
                preferred_element_type=jnp.float32) + b1
    h = jax.nn.gelu(h, approximate=True)
    y = jnp.dot(h.astype(jnp.bfloat16), w2.astype(jnp.bfloat16),
                preferred_element_type=jnp.float32) + b2
    return (y + x2).reshape(x.shape)


if __name__ == "__main__":
    # Small but lane-dense demo shapes (D, H multiples of 128).
    B, N, D, H = 2, 16, 128, 256

    key = jax.random.PRNGKey(0)
    kx, k1, k2, k3, k4 = jax.random.split(key, 5)

    x = jax.random.normal(kx, (B, N, D), dtype=jnp.float32)
    w1 = jax.random.normal(k1, (D, H), dtype=jnp.float32) * (1.0 / D ** 0.5)
    b1 = jax.random.normal(k2, (H,), dtype=jnp.float32) * 0.01
    w2 = jax.random.normal(k3, (H, D), dtype=jnp.float32) * (1.0 / H ** 0.5)
    b2 = jax.random.normal(k4, (D,), dtype=jnp.float32) * 0.01

    ref = _reference(x, w1, b1, w2, b2)

    # 1) Resident-weight fast path (the default for these shapes).
    out_r = jax.block_until_ready(residual_feedforward(x, w1, b1, w2, b2))
    assert out_r.shape == x.shape and out_r.dtype == x.dtype
    assert jnp.allclose(out_r, ref, atol=1e-2, rtol=1e-2), "resident path mismatch"

    # 2) H-tiled accumulator path (forced), exercising the reduction grid axis.
    out_t = jax.block_until_ready(
        residual_feedforward(x, w1, b1, w2, b2, tk=128, prefer_resident=False))
    assert out_t.shape == x.shape and out_t.dtype == x.dtype
    assert jnp.allclose(out_t, ref, atol=1e-2, rtol=1e-2), "tiled path mismatch"

    print("KERNEL_OK")
</pallas_src>

<mosaic_0001>
module attributes {stable_mosaic.version = 11 : i64} {
  func.func @_residual_ff_resident_kernel(%arg0: i32, %arg1: memref<32x128xf32, #tpu.memory_space<vmem>>, %arg2: memref<128x256xbf16, #tpu.memory_space<vmem>>, %arg3: memref<1x256xf32, #tpu.memory_space<vmem>>, %arg4: memref<256x128xbf16, #tpu.memory_space<vmem>>, %arg5: memref<1x128xf32, #tpu.memory_space<vmem>>, %arg6: memref<32x128xf32, #tpu.memory_space<vmem>>) attributes {dimension_semantics = [#tpu.dimension_semantics<parallel>], iteration_bounds = array<i64: 1>, scalar_prefetch = 0 : i64, scratch_operands = 0 : i64, tpu.core_type = #tpu.core_type<tc>, window_params = [{transform_indices = @transform_0, window_bounds = array<i64: 32, 128>}, {pipeline_mode = #tpu.pipeline_mode<synchronous>, transform_indices = @transform_1, window_bounds = array<i64: 128, 256>}, {pipeline_mode = #tpu.pipeline_mode<synchronous>, transform_indices = @transform_2, window_bounds = array<i64: 1, 256>}, {pipeline_mode = #tpu.pipeline_mode<synchronous>, transform_indices = @transform_3, window_bounds = array<i64: 256, 128>}, {pipeline_mode = #tpu.pipeline_mode<synchronous>, transform_indices = @transform_4, window_bounds = array<i64: 1, 128>}, {transform_indices = @transform_5, window_bounds = array<i64: 32, 128>}]} {
    %c0 = arith.constant 0 : index
    %c0_0 = arith.constant 0 : index
    %0 = vector.load %arg1[%c0, %c0_0] : memref<32x128xf32, #tpu.memory_space<vmem>>, vector<32x128xf32>
    %1 = arith.truncf %0 : vector<32x128xf32> to vector<32x128xbf16>
    %c0_1 = arith.constant 0 : index
    %c0_2 = arith.constant 0 : index
    %2 = vector.load %arg2[%c0_1, %c0_2] : memref<128x256xbf16, #tpu.memory_space<vmem>>, vector<128x256xbf16>
    %cst = arith.constant dense<0.000000e+00> : vector<32x256xf32>
    %3 = tpu.matmul %1, %2, %cst {dimension_numbers = #tpu.dot_dimension_numbers<[1], [0], [0], [1], [0, 0, 1, 1], [], []>} : vector<32x128xbf16>, vector<128x256xbf16>, vector<32x256xf32> -> vector<32x256xf32>
    %c0_3 = arith.constant 0 : index
    %c0_4 = arith.constant 0 : index
    %4 = vector.load %arg3[%c0_3, %c0_4] : memref<1x256xf32, #tpu.memory_space<vmem>>, vector<1x256xf32>
    %5 = vector.broadcast %4 : vector<1x256xf32> to vector<32x256xf32>
    %6 = arith.addf %3, %5 : vector<32x256xf32>
    %7 = arith.mulf %6, %6 : vector<32x256xf32>
    %8 = arith.mulf %6, %7 : vector<32x256xf32>
    %cst_5 = arith.constant 4.471500e-02 : f32
    %9 = vector.broadcast %cst_5 : f32 to vector<32x256xf32>
    %10 = arith.mulf %9, %8 : vector<32x256xf32>
    %11 = arith.addf %6, %10 : vector<32x256xf32>
    %cst_6 = arith.constant 0.797884583 : f32
    %12 = vector.broadcast %cst_6 : f32 to vector<32x256xf32>
    %13 = arith.mulf %12, %11 : vector<32x256xf32>
    %14 = math.tanh %13 : vector<32x256xf32>
    %cst_7 = arith.constant 1.000000e+00 : f32
    %15 = vector.broadcast %cst_7 : f32 to vector<32x256xf32>
    %16 = arith.addf %15, %14 : vector<32x256xf32>
    %cst_8 = arith.constant 5.000000e-01 : f32
    %17 = vector.broadcast %cst_8 : f32 to vector<32x256xf32>
    %18 = arith.mulf %17, %16 : vector<32x256xf32>
    %19 = arith.mulf %6, %18 : vector<32x256xf32>
    %20 = arith.truncf %19 : vector<32x256xf32> to vector<32x256xbf16>
    %c0_9 = arith.constant 0 : index
    %c0_10 = arith.constant 0 : index
    %21 = vector.load %arg4[%c0_9, %c0_10] : memref<256x128xbf16, #tpu.memory_space<vmem>>, vector<256x128xbf16>
    %cst_11 = arith.constant dense<0.000000e+00> : vector<32x128xf32>
    %22 = tpu.matmul %20, %21, %cst_11 {dimension_numbers = #tpu.dot_dimension_numbers<[1], [0], [0], [1], [0, 0, 1, 1], [], []>} : vector<32x256xbf16>, vector<256x128xbf16>, vector<32x128xf32> -> vector<32x128xf32>
    %c0_12 = arith.constant 0 : index
    %c0_13 = arith.constant 0 : index
    %23 = vector.load %arg5[%c0_12, %c0_13] : memref<1x128xf32, #tpu.memory_space<vmem>>, vector<1x128xf32>
    %24 = vector.broadcast %23 : vector<1x128xf32> to vector<32x128xf32>
    %25 = arith.addf %22, %24 : vector<32x128xf32>
    %26 = arith.addf %25, %0 : vector<32x128xf32>
    %c0_14 = arith.constant 0 : index
    %c0_15 = arith.constant 0 : index
    %27 = vector.load %arg6[%c0_14, %c0_15] : memref<32x128xf32, #tpu.memory_space<vmem>>, vector<32x128xf32>
    tpu.vector_store %arg6[%c0_14, %c0_15], %26 {strides = array<i32>} : memref<32x128xf32, #tpu.memory_space<vmem>>, vector<32x128xf32>,
    return
  }
  func.func @transform_0(%arg0: i32) -> (i32, i32) {
    %c0_i32 = arith.constant 0 : i32
    %c0_i32_0 = arith.constant 0 : i32
    return %arg0, %c0_i32 : i32, i32
  }
  func.func @transform_1(%arg0: i32) -> (i32, i32) {
    %c0_i32 = arith.constant 0 : i32
    %c0_i32_0 = arith.constant 0 : i32
    %c0_i32_1 = arith.constant 0 : i32
    return %c0_i32, %c0_i32_0 : i32, i32
  }
  func.func @transform_2(%arg0: i32) -> (i32, i32) {
    %c0_i32 = arith.constant 0 : i32
    %c0_i32_0 = arith.constant 0 : i32
    %c0_i32_1 = arith.constant 0 : i32
    return %c0_i32, %c0_i32_0 : i32, i32
  }
  func.func @transform_3(%arg0: i32) -> (i32, i32) {
    %c0_i32 = arith.constant 0 : i32
    %c0_i32_0 = arith.constant 0 : i32
    %c0_i32_1 = arith.constant 0 : i32
    return %c0_i32, %c0_i32_0 : i32, i32
  }
  func.func @transform_4(%arg0: i32) -> (i32, i32) {
    %c0_i32 = arith.constant 0 : i32
    %c0_i32_0 = arith.constant 0 : i32
    %c0_i32_1 = arith.constant 0 : i32
    return %c0_i32, %c0_i32_0 : i32, i32
  }
  func.func @transform_5(%arg0: i32) -> (i32, i32) {
    %c0_i32 = arith.constant 0 : i32
    %c0_i32_0 = arith.constant 0 : i32
    return %arg0, %c0_i32 : i32, i32
  }
}

</mosaic_0001>

<llo_original>
// kernel: residual_feedforward.1
$region0: #{residual_feedforward.1}
  #allocation0 [shape = 'u32[]', space=smem, size = 0x4, offset = 0x4, fixed_abs, tag = 'smem constant byte address 0x4 - core index']
  #allocation1 [shape = 'u32[144,128]{1,0:T(1,128)}', space=vmem, size = 0x12000, scoped, tag = 'internal scratch']
  %s0 = inlined_call_operand.vmem [shape: f32[32,128], index: 0, kind: input, shape index: {}]
  %s1 = inlined_call_operand.vmem [shape: bf16[128,256], index: 1, kind: input, shape index: {}]
  %s2 = inlined_call_operand.vmem [shape: f32[1,256], index: 2, kind: input, shape index: {}]
  %s3 = inlined_call_operand.vmem [shape: bf16[256,128], index: 3, kind: input, shape index: {}]
  %s4 = inlined_call_operand.vmem [shape: f32[1,128], index: 4, kind: input, shape index: {}]
  %s5 = inlined_call_operand.hbm [shape: f32[32,128], index: 5, kind: output, shape index: {}]
  %s6 = sld [smem:[#allocation0]]
  $region30: #{residual_feedforward.1} parent=0
    _
  %s8 = ssub.s32 1, %s6
  %s9 = scalar_select 0, %s8, %s6
  $region1: #{residual_feedforward.1} parent=0
    #allocation2 [shape = 'u8[16384]{0}', space=vmem, size = 0x4000, scoped, tag = 'output window, operand 0, single buffered']
    #allocation3 [shape = 's32[1]{0}', space=sflag, size = 0x4, scoped, tag = 'scoped memory for residual_feedforward.1']
    %10 = vsyncpa [#allocation3], 0
    // Predicated region
    $region2: #{residual_feedforward.1} parent=1 // pred_check
      _
    $region3: #{residual_feedforward.1} parent=1 // pred_check_branch
      %12 = sbr.rel (0) target = $region5
    $region4: #{residual_feedforward.1} parent=1 // pred_region
      _
    $region5: #{residual_feedforward.1} parent=1 // pred_fallthru
      _
    // Predicated region
    $region6: #{residual_feedforward.1} parent=1 // pred_check
      _
    $region7: #{residual_feedforward.1} parent=1 // pred_check_branch
      %14 = sbr.rel (0) target = $region9
    $region8: #{residual_feedforward.1} parent=1 // pred_region
      _
    $region9: #{residual_feedforward.1} parent=1 // pred_fallthru
      _
    // Predicated region
    $region10: #{residual_feedforward.1} parent=1 // pred_check
      _
    $region11: #{residual_feedforward.1} parent=1 // pred_check_branch
      %16 = sbr.rel (0) target = $region13
    $region12: #{residual_feedforward.1} parent=1 // pred_region
      _
    $region13: #{residual_feedforward.1} parent=1 // pred_fallthru
      _
    // Predicated region
    $region14: #{residual_feedforward.1} parent=1 // pred_check
      _
    $region15: #{residual_feedforward.1} parent=1 // pred_check_branch
      %18 = sbr.rel (0) target = $region17
    $region16: #{residual_feedforward.1} parent=1 // pred_region
      _
    $region17: #{residual_feedforward.1} parent=1 // pred_fallthru
      _
    // Predicated region
    $region18: #{residual_feedforward.1} parent=1 // pred_check
      _
    $region19: #{residual_feedforward.1} parent=1 // pred_check_branch
      %20 = sbr.rel (0) target = $region21
    $region20: #{residual_feedforward.1} parent=1 // pred_region
      _
    $region21: #{residual_feedforward.1} parent=1 // pred_fallthru
      _
    %v22 = vld [vmem:[%s0] sm:$0xff]
    %v23 = vld [vmem:[%s0 + $0x8] sm:$0xff]
    %v24 = vld [vmem:[%s0 + $0x10] sm:$0xff]
    %v25 = vld [vmem:[%s0 + $0x18] sm:$0xff]
    %v26 = vpack.c.bf16 %v23, %v22
    %v27 = vpack.c.bf16 %v25, %v24
    %v28 = vld [vmem:[%s1] sm:$0xff]
    %v29 = vld [vmem:[%s1 + $0x8] sm:$0xff]
    %v30 = vld [vmem:[%s1 + $0x10] sm:$0xff]
    %v31 = vld [vmem:[%s1 + $0x18] sm:$0xff]
    %v32 = vld [vmem:[%s1 + $0x20] sm:$0xff]
    %v33 = vld [vmem:[%s1 + $0x28] sm:$0xff]
    %v34 = vld [vmem:[%s1 + $0x30] sm:$0xff]
    %v35 = vld [vmem:[%s1 + $0x38] sm:$0xff]
    %v36 = vld [vmem:[%s1 + $0x40] sm:$0xff]
    %v37 = vld [vmem:[%s1 + $0x48] sm:$0xff]
    %v38 = vld [vmem:[%s1 + $0x50] sm:$0xff]
    %v39 = vld [vmem:[%s1 + $0x58] sm:$0xff]
    %v40 = vld [vmem:[%s1 + $0x60] sm:$0xff]
    %v41 = vld [vmem:[%s1 + $0x68] sm:$0xff]
    %v42 = vld [vmem:[%s1 + $0x70] sm:$0xff]
    %v43 = vld [vmem:[%s1 + $0x78] sm:$0xff]
    %v44 = vld [vmem:[%s2] sm:$0x3]
    %v46 = vlaneseq
    %v47 = vshrl.u32 %v46, 7
    %v48 = vsub.s32 0, %v47
    %v49 = vrot.slane %v44, %v48
    %v50 = vlaneseq
    %v51 = vshrl.u32 %v50, 7
    %v52 = vsub.s32 1, %v51
    %v53 = vrot.slane %v44, %v52
    %v72 = vunpack.c.l.b16 %v28
    %v73 = vunpack.c.h.b16 %v28
    %v74 = vunpack.c.l.b16 %v29
    %v75 = vunpack.c.h.b16 %v29
    %v76 = vunpack.c.l.b16 %v30
    %v77 = vunpack.c.h.b16 %v30
    %v78 = vunpack.c.l.b16 %v31
    %v79 = vunpack.c.h.b16 %v31
    %v80 = vunpack.c.l.b16 %v32
    %v81 = vunpack.c.h.b16 %v32
    %v82 = vunpack.c.l.b16 %v33
    %v83 = vunpack.c.h.b16 %v33
    %v84 = vunpack.c.l.b16 %v34
    %v85 = vunpack.c.h.b16 %v34
    %v86 = vunpack.c.l.b16 %v35
    %v87 = vunpack.c.h.b16 %v35
    %v88 = vunpack.c.l.b16 %v36
    %v89 = vunpack.c.h.b16 %v36
    %v90 = vunpack.c.l.b16 %v37
    %v91 = vunpack.c.h.b16 %v37
    %v92 = vunpack.c.l.b16 %v38
    %v93 = vunpack.c.h.b16 %v38
    %v94 = vunpack.c.l.b16 %v39
    %v95 = vunpack.c.h.b16 %v39
    %v96 = vunpack.c.l.b16 %v40
    %v97 = vunpack.c.h.b16 %v40
    %v98 = vunpack.c.l.b16 %v41
    %v99 = vunpack.c.h.b16 %v41
    %v100 = vunpack.c.l.b16 %v42
    %v101 = vunpack.c.h.b16 %v42
    %v102 = vunpack.c.l.b16 %v43
    %v103 = vunpack.c.h.b16 %v43
    %v104 = vpack.c.b16 %v74, %v72
    %v105 = vpack.c.b16 %v75, %v73
    %v106 = vpack.c.b16 %v78, %v76
    %v107 = vpack.c.b16 %v79, %v77
    %v108 = vpack.c.b16 %v82, %v80
    %v109 = vpack.c.b16 %v83, %v81
    %v110 = vpack.c.b16 %v86, %v84
    %v111 = vpack.c.b16 %v87, %v85
    %v112 = vpack.c.b16 %v90, %v88
    %v113 = vpack.c.b16 %v91, %v89
    %v114 = vpack.c.b16 %v94, %v92
    %v115 = vpack.c.b16 %v95, %v93
    %v116 = vpack.c.b16 %v98, %v96
    %v117 = vpack.c.b16 %v99, %v97
    %v118 = vpack.c.b16 %v102, %v100
    %v119 = vpack.c.b16 %v103, %v101
    %136 = vmatprep.subr.bf16.mxu0 %v119
    %137 = vmatpush1.bf16.msra.mxu0 %v118
    %138 = vmatprep.subr.bf16.mxu0 %v117
    %139 = vmatpush1.bf16.msra.mxu0 %v116
    %140 = vmatprep.subr.bf16.mxu0 %v115
    %141 = vmatpush1.bf16.msra.mxu0 %v114
    %142 = vmatprep.subr.bf16.mxu0 %v113
    %143 = vmatpush1.bf16.msra.mxu0 %v112
    %144 = vmatprep.subr.bf16.mxu0 %v111
    %145 = vmatpush1.bf16.msra.mxu0 %v110
    %146 = vmatprep.subr.bf16.mxu0 %v109
    %147 = vmatpush1.bf16.msra.mxu0 %v108
    %148 = vmatprep.subr.bf16.mxu0 %v107
    %149 = vmatpush1.bf16.msra.mxu0 %v106
    %150 = vmatprep.subr.bf16.mxu0 %v105
    %151 = vmatpush1.bf16.msra.mxu0 %v104
    %152 = vmatprep.subr.bf16.mxu0 0
    %153 = vmatpush2.bf16.msra.mxu0 0
    %154 = vmatprep.subr.bf16.mxu0 0
    %155 = vmatpush2.bf16.msra.mxu0 0
    %156 = vmatprep.subr.bf16.mxu0 0
    %157 = vmatpush2.bf16.msra.mxu0 0
    %158 = vmatprep.subr.bf16.mxu0 0
    %159 = vmatpush2.bf16.msra.mxu0 0
    %160 = vmatprep.subr.bf16.mxu0 0
    %161 = vmatpush2.bf16.msra.mxu0 0
    %162 = vmatprep.subr.bf16.mxu0 0
    %163 = vmatpush2.bf16.msra.mxu0 0
    %164 = vmatprep.subr.bf16.mxu0 0
    %165 = vmatpush2.bf16.msra.mxu0 0
    %166 = vmatprep.subr.bf16.mxu0 0
    %167 = vmatpush2.bf16.msra.mxu0 0
    %168 = vmatprep.mubr.bf16.mxu0 0
    %169 = vmatmul.mubr.bf16.gmra.mxu0 %v26
    %v170 = vpop.f32.mrf.mxu0
    %v171 = vadd.f32 %v49, %v170
    %v172 = vpop.f32.mrf.mxu0
    %v173 = vadd.f32 %v53, %v172
    %v174 = vpop.f32.mrf.mxu0
    %v175 = vadd.f32 %v49, %v174
    %v176 = vpop.f32.mrf.mxu0
    %v177 = vadd.f32 %v53, %v176
    %178 = vmatprep.mubr.bf16.mxu0 0
    %179 = vmatmul.mubr.bf16.gmra.mxu0 %v27
    %v180 = vpop.f32.mrf.mxu0
    %v181 = vadd.f32 %v49, %v180
    %v182 = vpop.f32.mrf.mxu0
    %v183 = vadd.f32 %v53, %v182
    %v184 = vpop.f32.mrf.mxu0
    %v185 = vadd.f32 %v49, %v184
    %v186 = vpop.f32.mrf.mxu0
    %v187 = vadd.f32 %v53, %v186
    %188 = vdwg.mxu0
    %v189 = vmul.f32 %v171, %v171
    %v190 = vmul.f32 %v173, %v173
    %v191 = vmul.f32 %v175, %v175
    %v192 = vmul.f32 %v177, %v177
    %v193 = vmul.f32 %v181, %v181
    %v194 = vmul.f32 %v183, %v183
    %v195 = vmul.f32 %v185, %v185
    %v196 = vmul.f32 %v187, %v187
    %v197 = vmul.f32 %v171, %v189
    %v198 = vmul.f32 %v173, %v190
    %v199 = vmul.f32 %v175, %v191
    %v200 = vmul.f32 %v177, %v192
    %v201 = vmul.f32 %v181, %v193
    %v202 = vmul.f32 %v183, %v194
    %v203 = vmul.f32 %v185, %v195
    %v204 = vmul.f32 %v187, %v196
    %v205 = vmul.f32 %v197, 0.044715
    %v206 = vmul.f32 %v198, 0.044715
    %v207 = vmul.f32 %v199, 0.044715
    %v208 = vmul.f32 %v200, 0.044715
    %v209 = vmul.f32 %v201, 0.044715
    %v210 = vmul.f32 %v202, 0.044715
    %v211 = vmul.f32 %v203, 0.044715
    %v212 = vmul.f32 %v204, 0.044715
    %v213 = vadd.f32 %v171, %v205
    %v214 = vadd.f32 %v173, %v206
    %v215 = vadd.f32 %v175, %v207
    %v216 = vadd.f32 %v177, %v208
    %v217 = vadd.f32 %v181, %v209
    %v218 = vadd.f32 %v183, %v210
    %v219 = vadd.f32 %v185, %v211
    %v220 = vadd.f32 %v187, %v212
    %v221 = vmul.f32 %v213, 0.7978846
    %v222 = vmul.f32 %v214, 0.7978846
    %v223 = vmul.f32 %v215, 0.7978846
    %v224 = vmul.f32 %v216, 0.7978846
    %v225 = vmul.f32 %v217, 0.7978846
    %v226 = vmul.f32 %v218, 0.7978846
    %v227 = vmul.f32 %v219, 0.7978846
    %v228 = vmul.f32 %v220, 0.7978846
    %v229 = vtanh.pop %v221
    %v230 = vtanh.pop %v222
    %v231 = vtanh.pop %v223
    %v232 = vtanh.pop %v224
    %v233 = vtanh.pop %v225
    %v234 = vtanh.pop %v226
    %v235 = vtanh.pop %v227
    %v236 = vtanh.pop %v228
    %v237 = vadd.f32 %v229, 1.0
    %v238 = vadd.f32 %v230, 1.0
    %v239 = vadd.f32 %v231, 1.0
    %v240 = vadd.f32 %v232, 1.0
    %v241 = vadd.f32 %v233, 1.0
    %v242 = vadd.f32 %v234, 1.0
    %v243 = vadd.f32 %v235, 1.0
    %v244 = vadd.f32 %v236, 1.0
    %v245 = vmul.f32 %v237, 0.5
    %v246 = vmul.f32 %v238, 0.5
    %v247 = vmul.f32 %v239, 0.5
    %v248 = vmul.f32 %v240, 0.5
    %v249 = vmul.f32 %v241, 0.5
    %v250 = vmul.f32 %v242, 0.5
    %v251 = vmul.f32 %v243, 0.5
    %v252 = vmul.f32 %v244, 0.5
    %v253 = vmul.f32 %v171, %v245
    %v254 = vmul.f32 %v173, %v246
    %v255 = vmul.f32 %v175, %v247
    %v256 = vmul.f32 %v177, %v248
    %v257 = vmul.f32 %v181, %v249
    %v258 = vmul.f32 %v183, %v250
    %v259 = vmul.f32 %v185, %v251
    %v260 = vmul.f32 %v187, %v252
    %v261 = vpack.c.bf16 %v255, %v253
    %v262 = vpack.c.bf16 %v256, %v254
    %v263 = vpack.c.bf16 %v259, %v257
    %v264 = vpack.c.bf16 %v260, %v258
    %v265 = vld [vmem:[%s3] sm:$0xf]
    %v266 = vld [vmem:[%s3 + $0x4] sm:$0xf]
    %v267 = vld [vmem:[%s3 + $0x8] sm:$0xf]
    %v268 = vld [vmem:[%s3 + $0xc] sm:$0xf]
    %v269 = vld [vmem:[%s3 + $0x10] sm:$0xf]
    %v270 = vld [vmem:[%s3 + $0x14] sm:$0xf]
    %v271 = vld [vmem:[%s3 + $0x18] sm:$0xf]
    %v272 = vld [vmem:[%s3 + $0x1c] sm:$0xf]
    %v273 = vld [vmem:[%s3 + $0x20] sm:$0xf]
    %v274 = vld [vmem:[%s3 + $0x24] sm:$0xf]
    %v275 = vld [vmem:[%s3 + $0x28] sm:$0xf]
    %v276 = vld [vmem:[%s3 + $0x2c] sm:$0xf]
    %v277 = vld [vmem:[%s3 + $0x30] sm:$0xf]
    %v278 = vld [vmem:[%s3 + $0x34] sm:$0xf]
    %v279 = vld [vmem:[%s3 + $0x38] sm:$0xf]
    %v280 = vld [vmem:[%s3 + $0x3c] sm:$0xf]
    %v281 = vld [vmem:[%s3 + $0x40] sm:$0xf]
    %v282 = vld [vmem:[%s3 + $0x44] sm:$0xf]
    %v283 = vld [vmem:[%s3 + $0x48] sm:$0xf]
    %v284 = vld [vmem:[%s3 + $0x4c] sm:$0xf]
    %v285 = vld [vmem:[%s3 + $0x50] sm:$0xf]
    %v286 = vld [vmem:[%s3 + $0x54] sm:$0xf]
    %v287 = vld [vmem:[%s3 + $0x58] sm:$0xf]
    %v288 = vld [vmem:[%s3 + $0x5c] sm:$0xf]
    %v289 = vld [vmem:[%s3 + $0x60] sm:$0xf]
    %v290 = vld [vmem:[%s3 + $0x64] sm:$0xf]
    %v291 = vld [vmem:[%s3 + $0x68] sm:$0xf]
    %v292 = vld [vmem:[%s3 + $0x6c] sm:$0xf]
    %v293 = vld [vmem:[%s3 + $0x70] sm:$0xf]
    %v294 = vld [vmem:[%s3 + $0x74] sm:$0xf]
    %v295 = vld [vmem:[%s3 + $0x78] sm:$0xf]
    %v296 = vld [vmem:[%s3 + $0x7c] sm:$0xf]
    %v297 = vld [vmem:[%s4] sm:$0x1]
    %v299 = vlaneseq
    %v300 = vshrl.u32 %v299, 7
    %v301 = vsub.s32 0, %v300
    %v302 = vrot.slane %v297, %v301
    %v336 = vunpack.c.l.b16 %v265
    %v337 = vunpack.c.l.b16 %v266
    %v338 = vunpack.c.l.b16 %v267
    %v339 = vunpack.c.l.b16 %v268
    %v340 = vunpack.c.l.b16 %v269
    %v341 = vunpack.c.l.b16 %v270
    %v342 = vunpack.c.l.b16 %v271
    %v343 = vunpack.c.l.b16 %v272
    %v344 = vunpack.c.l.b16 %v273
    %v345 = vunpack.c.l.b16 %v274
    %v346 = vunpack.c.l.b16 %v275
    %v347 = vunpack.c.l.b16 %v276
    %v348 = vunpack.c.l.b16 %v277
    %v349 = vunpack.c.l.b16 %v278
    %v350 = vunpack.c.l.b16 %v279
    %v351 = vunpack.c.l.b16 %v280
    %v352 = vunpack.c.l.b16 %v281
    %v353 = vunpack.c.l.b16 %v282
    %v354 = vunpack.c.l.b16 %v283
    %v355 = vunpack.c.l.b16 %v284
    %v356 = vunpack.c.l.b16 %v285
    %v357 = vunpack.c.l.b16 %v286
    %v358 = vunpack.c.l.b16 %v287
    %v359 = vunpack.c.l.b16 %v288
    %v360 = vunpack.c.l.b16 %v289
    %v361 = vunpack.c.l.b16 %v290
    %v362 = vunpack.c.l.b16 %v291
    %v363 = vunpack.c.l.b16 %v292
    %v364 = vunpack.c.l.b16 %v293
    %v365 = vunpack.c.l.b16 %v294
    %v366 = vunpack.c.l.b16 %v295
    %v367 = vunpack.c.l.b16 %v296
    %v368 = vpack.c.b16 %v337, %v336
    %v369 = vpack.c.b16 %v339, %v338
    %v370 = vpack.c.b16 %v341, %v340
    %v371 = vpack.c.b16 %v343, %v342
    %v372 = vpack.c.b16 %v345, %v344
    %v373 = vpack.c.b16 %v347, %v346
    %v374 = vpack.c.b16 %v349, %v348
    %v375 = vpack.c.b16 %v351, %v350
    %v376 = vpack.c.b16 %v353, %v352
    %v377 = vpack.c.b16 %v355, %v354
    %v378 = vpack.c.b16 %v357, %v356
    %v379 = vpack.c.b16 %v359, %v358
    %v380 = vpack.c.b16 %v361, %v360
    %v381 = vpack.c.b16 %v363, %v362
    %v382 = vpack.c.b16 %v365, %v364
    %v383 = vpack.c.b16 %v367, %v366
    %400 = vmatprep.subr.bf16.mxu0 0
    %401 = vmatpush1.bf16.msra.mxu0 %v375
    %402 = vmatprep.subr.bf16.mxu0 0
    %403 = vmatpush1.bf16.msra.mxu0 %v374
    %404 = vmatprep.subr.bf16.mxu0 0
    %405 = vmatpush1.bf16.msra.mxu0 %v373
    %406 = vmatprep.subr.bf16.mxu0 0
    %407 = vmatpush1.bf16.msra.mxu0 %v372
    %408 = vmatprep.subr.bf16.mxu0 0
    %409 = vmatpush1.bf16.msra.mxu0 %v371
    %410 = vmatprep.subr.bf16.mxu0 0
    %411 = vmatpush1.bf16.msra.mxu0 %v370
    %412 = vmatprep.subr.bf16.mxu0 0
    %413 = vmatpush1.bf16.msra.mxu0 %v369
    %414 = vmatprep.subr.bf16.mxu0 0
    %415 = vmatpush1.bf16.msra.mxu0 %v368
    %416 = vmatprep.subr.bf16.mxu0 0
    %417 = vmatpush2.bf16.msra.mxu0 %v383
    %418 = vmatprep.subr.bf16.mxu0 0
    %419 = vmatpush2.bf16.msra.mxu0 %v382
    %420 = vmatprep.subr.bf16.mxu0 0
    %421 = vmatpush2.bf16.msra.mxu0 %v381
    %422 = vmatprep.subr.bf16.mxu0 0
    %423 = vmatpush2.bf16.msra.mxu0 %v380
    %424 = vmatprep.subr.bf16.mxu0 0
    %425 = vmatpush2.bf16.msra.mxu0 %v379
    %426 = vmatprep.subr.bf16.mxu0 0
    %427 = vmatpush2.bf16.msra.mxu0 %v378
    %428 = vmatprep.subr.bf16.mxu0 0
    %429 = vmatpush2.bf16.msra.mxu0 %v377
    %430 = vmatprep.subr.bf16.mxu0 0
    %431 = vmatpush2.bf16.msra.mxu0 %v376
    %432 = vmatprep.mubr.bf16.mxu0 %v262
    %433 = vmatmul.mubr.bf16.gmra.mxu0 %v261
    %v434 = vpop.f32.mrf.mxu0
    %v435 = vadd.f32 %v302, %v434
    %v436 = vpop.f32.mrf.mxu0
    %v437 = vpop.f32.mrf.mxu0
    %v438 = vadd.f32 %v302, %v437
    %v439 = vpop.f32.mrf.mxu0
    %440 = vmatprep.mubr.bf16.mxu0 %v264
    %441 = vmatmul.mubr.bf16.gmra.mxu0 %v263
    %v442 = vpop.f32.mrf.mxu0
    %v443 = vadd.f32 %v302, %v442
    %v444 = vpop.f32.mrf.mxu0
    %v445 = vpop.f32.mrf.mxu0
    %v446 = vadd.f32 %v302, %v445
    %v447 = vpop.f32.mrf.mxu0
    %448 = vdwg.mxu0
    %v449 = vadd.f32 %v435, %v22
    %v450 = vadd.f32 %v438, %v23
    %v451 = vadd.f32 %v443, %v24
    %v452 = vadd.f32 %v446, %v25
    %453 = vst [vmem:[#allocation2] sm:$0xff] %v449
    %454 = vst [vmem:[#allocation2 + $0x8] sm:$0xff] %v450
    %455 = vst [vmem:[#allocation2 + $0x10] sm:$0xff] %v451
    %456 = vst [vmem:[#allocation2 + $0x18] sm:$0xff] %v452
    // Predicated region
    $region22: #{residual_feedforward.1} parent=1 // pred_check
      _
    $region23: #{residual_feedforward.1} parent=1 // pred_check_branch
      %458 = sbr.rel (0) target = $region25
    $region24: #{residual_feedforward.1} parent=1 // pred_region
      %s460 = ssub.s32 512, 512
      %461 = vsyncadd [#allocation3], %s460
      %s462 = sshll.u32 [#allocation2], 4
      %s463 = int_to_ptr.vmem [resolvable:$true] %s462
      %468 = dma.vmem_to_hbm [thread:$0]  %s463, 512, %s5, [#allocation3], 128, 128, 8
    $region25: #{residual_feedforward.1} parent=1 // pred_fallthru
      _
    // Predicated region
    $region26: #{residual_feedforward.1} parent=1 // pred_check
      _
    $region27: #{residual_feedforward.1} parent=1 // pred_check_branch
      %470 = sbr.rel (0) target = $region29
    $region28: #{residual_feedforward.1} parent=1 // pred_region
      %471 = dma.done [#allocation3], 512
    $region29: #{residual_feedforward.1} parent=1 // pred_fallthru
      _
    %472 = vsyncpa [#allocation3], 1

</llo_original>
